<compile_context>
chip_gen: v6e
topology: v6e:2x2x1
jax: 0.10.0
libtpu: 0.0.40
codegen_flags: <defaults>
</compile_context>

<pallas_src>
import jax
import jax.numpy as jnp
from jax.experimental import pallas as pl
from jax.experimental.pallas import tpu as pltpu


def _attention_kernel(enc_ref, hid_ref, w_ref, b_ref, out_ref):
    # enc_ref: (Bt, S, H)  hid_ref: (Bt, 1, H)  w_ref: (H_in, H_out) pre-transposed
    # b_ref:   (1, H)      out_ref: (Bt, S)
    Bt, S, H = enc_ref.shape

    # One big energy matmul per grid step: (Bt*S, H) @ (H, H) on the MXU.
    enc = enc_ref[...].reshape(Bt * S, H)
    energy = jnp.tanh(
        jnp.dot(enc, w_ref[...], preferred_element_type=jnp.float32) + b_ref[...]
    ).reshape(Bt, S, H)

    # scores[b, s] = sum_h hid[b, h] * energy[b, s, h]  -- VPU mul + lane reduce
    # (an M=1 MXU matmul would waste the systolic array and pay push/pop latency).
    scores = jnp.sum(energy * hid_ref[...], axis=-1)          # (Bt, S)

    # Numerically stable softmax over S (matches torch F.softmax(dim=1)).
    m = jnp.max(scores, axis=-1, keepdims=True)
    e = jnp.exp(scores - m)
    out_ref[...] = (e / jnp.sum(e, axis=-1, keepdims=True)).astype(out_ref.dtype)


def _choose_block_b(B, S, H, itemsize):
    """Pick how many batches to fold per grid step.

    Constraints: Bt divides B; (Bt == B or Bt % 8 == 0) so the (Bt, S) output
    block satisfies TPU sublane tiling; double-buffered enc tile stays well
    under the v7x scoped-VMEM default.
    """
    budget = 8 << 20   # bytes per enc buffer (pipeline double-buffers it)
    cands = [d for d in range(1, B + 1)
             if B % d == 0 and (d == B or d % 8 == 0)
             and d * S * H * itemsize <= budget]
    if not cands:
        return B
    # Prefer the smallest block giving a full MXU pass (M = Bt*S >= 256) while
    # keeping >=2 grid steps (v7x megacore); otherwise take the largest block
    # to amortize the ~0.35us/step grid overhead on tiny problems.
    for d in cands:
        if d * S >= 256 and B // d >= 2:
            return d
    return cands[-1]


def attention_general(hidden, encoder_outputs, weight, bias):
    """hidden: (1, B, H); encoder_outputs: (B, S, H); weight: (H_out, H_in) nn.Linear
    weight; bias: (H,). Returns softmax attention weights of shape (B, S)."""
    B, S, H = encoder_outputs.shape
    itemsize = jnp.dtype(encoder_outputs.dtype).itemsize

    hid = hidden[0][:, None, :]            # (B, 1, H)  -- permute/squeeze is glue
    w_t = weight.T                         # (H_in, H_out): canonical (K, N) for MXU
    bias2 = bias.reshape(1, H)

    Bt = _choose_block_b(B, S, H, itemsize)
    grid = (B // Bt,)

    # NOTE: for v6e/v7x throughput one could cast enc/hid/w_t to bf16 here (MXU
    # runs bf16 at full rate, f32 accumulation kept via preferred_element_type);
    # kept f32 to preserve tight numerical parity with the PyTorch reference.
    cost = pl.CostEstimate(
        flops=2 * B * S * H * H + 2 * B * S * H,
        transcendentals=B * S * H + B * S,
        bytes_accessed=(B * S * H + B * H + H * H + H + B * S) * itemsize,
    )

    out = pl.pallas_call(
        _attention_kernel,
        out_shape=jax.ShapeDtypeStruct((B, S), jnp.float32),
        grid_spec=pltpu.PrefetchScalarGridSpec(
            num_scalar_prefetch=0,
            grid=grid,
            in_specs=[
                pl.BlockSpec((Bt, S, H), lambda b: (b, 0, 0)),   # encoder_outputs
                pl.BlockSpec((Bt, 1, H), lambda b: (b, 0, 0)),   # hidden (per batch)
                pl.BlockSpec((H, H),     lambda b: (0, 0)),      # attn weight (K, N)
                pl.BlockSpec((1, H),     lambda b: (0, 0)),      # attn bias
            ],
            out_specs=pl.BlockSpec((Bt, S), lambda b: (b, 0)),
        ),
        compiler_params=pltpu.CompilerParams(dimension_semantics=("parallel",)),
        cost_estimate=cost,
    )(encoder_outputs, hid, w_t, bias2)
    return out                              # (B, S)


def _reference(hidden, encoder_outputs, weight, bias):
    # Literal transcription of the PyTorch forward for verification.
    enc = jnp.transpose(encoder_outputs, (1, 0, 2))                   # (S, B, H)
    energy = jnp.tanh(jnp.einsum('sbh,oh->sbo', enc, weight) + bias)  # (S, B, H)
    energy = jnp.transpose(energy, (1, 2, 0))                         # (B, H, S)
    hid = jnp.transpose(hidden, (1, 0, 2))                            # (B, 1, H)
    scores = jnp.einsum('bmh,bhs->bms', hid, energy)[:, 0, :]         # (B, S)
    return jax.nn.softmax(scores, axis=1)


if __name__ == "__main__":
    B, S, H = 2, 8, 32

    key = jax.random.PRNGKey(0)
    k_hid, k_enc, k_w, k_b = jax.random.split(key, 4)

    hidden = jax.random.normal(k_hid, (1, B, H), dtype=jnp.float32)
    encoder_outputs = jax.random.normal(k_enc, (B, S, H), dtype=jnp.float32)

    # Deterministic nn.Linear-style init: U(-1/sqrt(H), 1/sqrt(H))
    bound = 1.0 / (H ** 0.5)
    weight = jax.random.uniform(k_w, (H, H), jnp.float32, -bound, bound)
    bias = jax.random.uniform(k_b, (H,), jnp.float32, -bound, bound)

    out = attention_general(hidden, encoder_outputs, weight, bias)
    out = jax.block_until_ready(out)

    ref = _reference(hidden, encoder_outputs, weight, bias)
    assert out.shape == (B, S)
    assert jnp.allclose(out, ref, atol=1e-5, rtol=1e-5), "mismatch vs reference"
    assert jnp.allclose(jnp.sum(out, axis=1), 1.0, atol=1e-5)

    print("KERNEL_OK")
</pallas_src>

<mosaic_0001>
module attributes {stable_mosaic.version = 11 : i64} {
  func.func @_attention_kernel(%arg0: i32, %arg1: memref<2x8x32xf32, #tpu.memory_space<vmem>>, %arg2: memref<2x1x32xf32, #tpu.memory_space<vmem>>, %arg3: memref<32x32xf32, #tpu.memory_space<vmem>>, %arg4: memref<1x32xf32, #tpu.memory_space<vmem>>, %arg5: memref<2x8xf32, #tpu.memory_space<vmem>>) attributes {dimension_semantics = [#tpu.dimension_semantics<parallel>], iteration_bounds = array<i64: 1>, scalar_prefetch = 0 : i64, scratch_operands = 0 : i64, tpu.core_type = #tpu.core_type<tc>, window_params = [{transform_indices = @transform_0, window_bounds = array<i64: 2, 8, 32>}, {transform_indices = @transform_1, window_bounds = array<i64: 2, 1, 32>}, {pipeline_mode = #tpu.pipeline_mode<synchronous>, transform_indices = @transform_2, window_bounds = array<i64: 32, 32>}, {pipeline_mode = #tpu.pipeline_mode<synchronous>, transform_indices = @transform_3, window_bounds = array<i64: 1, 32>}, {transform_indices = @transform_4, window_bounds = array<i64: 2, 8>}]} {
    %c0 = arith.constant 0 : index
    %c0_0 = arith.constant 0 : index
    %c0_1 = arith.constant 0 : index
    %0 = vector.load %arg1[%c0, %c0_0, %c0_1] : memref<2x8x32xf32, #tpu.memory_space<vmem>>, vector<2x8x32xf32>
    %1 = vector.shape_cast %0 : vector<2x8x32xf32> to vector<16x32xf32>
    %c0_2 = arith.constant 0 : index
    %c0_3 = arith.constant 0 : index
    %2 = vector.load %arg3[%c0_2, %c0_3] : memref<32x32xf32, #tpu.memory_space<vmem>>, vector<32x32xf32>
    %cst = arith.constant dense<0.000000e+00> : vector<16x32xf32>
    %3 = tpu.matmul %1, %2, %cst {dimension_numbers = #tpu.dot_dimension_numbers<[1], [0], [0], [1], [0, 0, 1, 1], [], []>} : vector<16x32xf32>, vector<32x32xf32>, vector<16x32xf32> -> vector<16x32xf32>
    %c0_4 = arith.constant 0 : index
    %c0_5 = arith.constant 0 : index
    %4 = vector.load %arg4[%c0_4, %c0_5] : memref<1x32xf32, #tpu.memory_space<vmem>>, vector<1x32xf32>
    %5 = vector.broadcast %4 : vector<1x32xf32> to vector<16x32xf32>
    %6 = arith.addf %3, %5 : vector<16x32xf32>
    %7 = math.tanh %6 : vector<16x32xf32>
    %8 = vector.shape_cast %7 : vector<16x32xf32> to vector<2x8x32xf32>
    %c0_6 = arith.constant 0 : index
    %c0_7 = arith.constant 0 : index
    %c0_8 = arith.constant 0 : index
    %9 = vector.load %arg2[%c0_6, %c0_7, %c0_8] : memref<2x1x32xf32, #tpu.memory_space<vmem>>, vector<2x1x32xf32>
    %10 = vector.broadcast %9 : vector<2x1x32xf32> to vector<2x8x32xf32>
    %11 = arith.mulf %8, %10 : vector<2x8x32xf32>
    %cst_9 = arith.constant dense<0.000000e+00> : vector<2x8xf32>
    %12 = vector.multi_reduction <add>, %11, %cst_9 [2] : vector<2x8x32xf32> to vector<2x8xf32>
    %cst_10 = arith.constant dense<0xFF800000> : vector<2xf32>
    %13 = vector.multi_reduction <maximumf>, %12, %cst_10 [1] : vector<2x8xf32> to vector<2xf32>
    %14 = vector.shape_cast %13 : vector<2xf32> to vector<2x1xf32>
    %15 = vector.broadcast %14 : vector<2x1xf32> to vector<2x8xf32>
    %16 = arith.subf %12, %15 : vector<2x8xf32>
    %17 = math.exp %16 : vector<2x8xf32>
    %cst_11 = arith.constant dense<0.000000e+00> : vector<2xf32>
    %18 = vector.multi_reduction <add>, %17, %cst_11 [1] : vector<2x8xf32> to vector<2xf32>
    %19 = vector.shape_cast %18 : vector<2xf32> to vector<2x1xf32>
    %20 = vector.broadcast %19 : vector<2x1xf32> to vector<2x8xf32>
    %21 = arith.divf %17, %20 : vector<2x8xf32>
    %c0_12 = arith.constant 0 : index
    %c0_13 = arith.constant 0 : index
    %22 = vector.load %arg5[%c0_12, %c0_13] : memref<2x8xf32, #tpu.memory_space<vmem>>, vector<2x8xf32>
    tpu.vector_store %arg5[%c0_12, %c0_13], %21 {strides = array<i32>} : memref<2x8xf32, #tpu.memory_space<vmem>>, vector<2x8xf32>,
    return
  }
  func.func @transform_0(%arg0: i32) -> (i32, i32, i32) {
    %c0_i32 = arith.constant 0 : i32
    %c0_i32_0 = arith.constant 0 : i32
    %c0_i32_1 = arith.constant 0 : i32
    return %arg0, %c0_i32, %c0_i32_0 : i32, i32, i32
  }
  func.func @transform_1(%arg0: i32) -> (i32, i32, i32) {
    %c0_i32 = arith.constant 0 : i32
    %c0_i32_0 = arith.constant 0 : i32
    %c0_i32_1 = arith.constant 0 : i32
    return %arg0, %c0_i32, %c0_i32_0 : i32, i32, i32
  }
  func.func @transform_2(%arg0: i32) -> (i32, i32) {
    %c0_i32 = arith.constant 0 : i32
    %c0_i32_0 = arith.constant 0 : i32
    %c0_i32_1 = arith.constant 0 : i32
    return %c0_i32, %c0_i32_0 : i32, i32
  }
  func.func @transform_3(%arg0: i32) -> (i32, i32) {
    %c0_i32 = arith.constant 0 : i32
    %c0_i32_0 = arith.constant 0 : i32
    %c0_i32_1 = arith.constant 0 : i32
    return %c0_i32, %c0_i32_0 : i32, i32
  }
  func.func @transform_4(%arg0: i32) -> (i32, i32) {
    %c0_i32 = arith.constant 0 : i32
    %c0_i32_0 = arith.constant 0 : i32
    return %arg0, %c0_i32 : i32, i32
  }
}

</mosaic_0001>

<llo_original>
// kernel: tpu_custom_call.1
$region0: #{tpu_custom_call.1}
  #allocation0 [shape = 'u32[]', space=smem, size = 0x4, offset = 0x4, fixed_abs, tag = 'smem constant byte address 0x4 - core index']
  #allocation1 [shape = 'u32[144,128]{1,0:T(1,128)}', space=vmem, size = 0x12000, scoped, tag = 'internal scratch']
  %s0 = inlined_call_operand.hbm [shape: f32[2,8,32], index: 0, kind: input, shape index: {}]
  %s1 = inlined_call_operand.hbm [shape: f32[2,1,32], index: 1, kind: input, shape index: {}]
  %s2 = inlined_call_operand.hbm [shape: f32[32,32], index: 2, kind: input, shape index: {}]
  %s3 = inlined_call_operand.vmem [shape: f32[1,32], index: 3, kind: input, shape index: {}]
  %s4 = inlined_call_operand.hbm [shape: f32[2,8], index: 4, kind: output, shape index: {}]
  %s5 = sld [smem:[#allocation0]]
  $region38: #{tpu_custom_call.1} parent=0
    _
  %s7 = ssub.s32 1, %s5
  %s8 = scalar_select 0, %s7, %s5
  $region1: #{tpu_custom_call.1} parent=0
    #allocation2 [shape = 'u8[8192]{0}', space=vmem, size = 0x2000, scoped, tag = 'input window, operand 0, single buffered']
    #allocation3 [shape = 's32[1]{0}', space=sflag, size = 0x4, scoped, tag = 'scoped memory for tpu_custom_call.1']
    #allocation4 [shape = 's32[1]{0}', space=sflag, size = 0x4, scoped, tag = 'scoped memory for tpu_custom_call.1']
    #allocation5 [shape = 'u8[1024]{0}', space=vmem, size = 0x400, scoped, tag = 'input window, operand 1, single buffered']
    #allocation6 [shape = 's32[1]{0}', space=sflag, size = 0x4, scoped, tag = 'scoped memory for tpu_custom_call.1']
    #allocation7 [shape = 'u8[16384]{0}', space=vmem, size = 0x4000, scoped, tag = 'input window, operand 2, single buffered']
    #allocation8 [shape = 'u8[1024]{0}', space=vmem, size = 0x400, scoped, tag = 'output window, operand 0, single buffered']
    %9 = vsyncpa [#allocation3], 0
    %10 = vsyncpa [#allocation6], 0
    %11 = vsyncpa [#allocation4], 0
    // Predicated region
    $region2: #{tpu_custom_call.1} parent=1 // pred_check
      _
    $region3: #{tpu_custom_call.1} parent=1 // pred_check_branch
      %13 = sbr.rel (0) target = $region5
    $region4: #{tpu_custom_call.1} parent=1 // pred_region
      %s15 = ssub.s32 256, 256
      %16 = vsyncadd [#allocation3], %s15
      %s17 = sshll.u32 [#allocation2], 4
      %s18 = int_to_ptr.vmem [resolvable:$true] %s17
      %23 = dma.hbm_to_vmem [thread:$0]  %s0, 256, %s18, [#allocation3], 128, 128, 8
    $region5: #{tpu_custom_call.1} parent=1 // pred_fallthru
      _
    // Predicated region
    $region6: #{tpu_custom_call.1} parent=1 // pred_check
      _
    $region7: #{tpu_custom_call.1} parent=1 // pred_check_branch
      %25 = sbr.rel (0) target = $region9
    $region8: #{tpu_custom_call.1} parent=1 // pred_region
      %s27 = ssub.s32 32, 32
      %28 = vsyncadd [#allocation6], %s27
      %s29 = sshll.u32 [#allocation5], 4
      %s30 = int_to_ptr.vmem [resolvable:$true] %s29
      %35 = dma.hbm_to_vmem [thread:$0]  %s1, 32, %s30, [#allocation6], 16, 16, 1
    $region9: #{tpu_custom_call.1} parent=1 // pred_fallthru
      _
    // Predicated region
    $region10: #{tpu_custom_call.1} parent=1 // pred_check
      _
    $region11: #{tpu_custom_call.1} parent=1 // pred_check_branch
      %37 = sbr.rel (0) target = $region13
    $region12: #{tpu_custom_call.1} parent=1 // pred_region
      %s39 = ssub.s32 512, 512
      %40 = vsyncadd [#allocation6], %s39
      %s41 = sshll.u32 [#allocation7], 4
      %s42 = int_to_ptr.vmem [resolvable:$true] %s41
      %47 = dma.hbm_to_vmem [thread:$0]  %s2, 512, %s42, [#allocation6], 128, 128, 8
    $region13: #{tpu_custom_call.1} parent=1 // pred_fallthru
      _
    // Predicated region
    $region14: #{tpu_custom_call.1} parent=1 // pred_check
      _
    $region15: #{tpu_custom_call.1} parent=1 // pred_check_branch
      %49 = sbr.rel (0) target = $region17
    $region16: #{tpu_custom_call.1} parent=1 // pred_region
      _
    $region17: #{tpu_custom_call.1} parent=1 // pred_fallthru
      _
    // Predicated region
    $region18: #{tpu_custom_call.1} parent=1 // pred_check
      _
    $region19: #{tpu_custom_call.1} parent=1 // pred_check_branch
      %51 = sbr.rel (0) target = $region21
    $region20: #{tpu_custom_call.1} parent=1 // pred_region
      %52 = dma.done [#allocation3], 256
    $region21: #{tpu_custom_call.1} parent=1 // pred_fallthru
      _
    // Predicated region
    $region22: #{tpu_custom_call.1} parent=1 // pred_check
      _
    $region23: #{tpu_custom_call.1} parent=1 // pred_check_branch
      %54 = sbr.rel (0) target = $region25
    $region24: #{tpu_custom_call.1} parent=1 // pred_region
      %55 = dma.done [#allocation6], 32
    $region25: #{tpu_custom_call.1} parent=1 // pred_fallthru
      _
    // Predicated region
    $region26: #{tpu_custom_call.1} parent=1 // pred_check
      _
    $region27: #{tpu_custom_call.1} parent=1 // pred_check_branch
      %57 = sbr.rel (0) target = $region29
    $region28: #{tpu_custom_call.1} parent=1 // pred_region
      %58 = dma.done [#allocation6], 512
    $region29: #{tpu_custom_call.1} parent=1 // pred_fallthru
      _
    %v59 = vld [vmem:[#allocation2] sm:$0xff]
    %v60 = vld [vmem:[#allocation2 + $0x8] sm:$0xff]
    %v61 = vld [vmem:[#allocation7] sm:$0xff]
    %v62 = vld [vmem:[#allocation7 + $0x8] sm:$0xff]
    %v63 = vld [vmem:[#allocation7 + $0x10] sm:$0xff]
    %v64 = vld [vmem:[#allocation7 + $0x18] sm:$0xff]
    %v65 = vld [vmem:[%s3] sm:$0x1]
    %v67 = vlaneseq
    %v68 = vshrl.u32 %v67, 7
    %v69 = vsub.s32 0, %v68
    %v70 = vrot.slane %v65, %v69
    %vm72 = vcmask 261120
    %v74 = vsel %vm72, %v59, 0
    %v77 = vsel %vm72, %v60, 0
    %79 = vmatprep.subr.mxu0 0.0
    %80 = vmatpush1.msra.mxu0 0.0
    %81 = vmatprep.subr.mxu0 0.0
    %82 = vmatpush1.msra.mxu0 0.0
    %83 = vmatprep.subr.mxu0 0.0
    %84 = vmatpush1.msra.mxu0 0.0
    %85 = vmatprep.subr.mxu0 0.0
    %86 = vmatpush1.msra.mxu0 0.0
    %87 = vmatprep.subr.mxu0 0.0
    %88 = vmatpush1.msra.mxu0 0.0
    %89 = vmatprep.subr.mxu0 0.0
    %90 = vmatpush1.msra.mxu0 0.0
    %91 = vmatprep.subr.mxu0 0.0
    %92 = vmatpush1.msra.mxu0 0.0
    %93 = vmatprep.subr.mxu0 0.0
    %94 = vmatpush1.msra.mxu0 0.0
    %95 = vmatprep.subr.mxu0 0.0
    %96 = vmatpush1.msra.mxu0 0.0
    %97 = vmatprep.subr.mxu0 0.0
    %98 = vmatpush1.msra.mxu0 0.0
    %99 = vmatprep.subr.mxu0 0.0
    %100 = vmatpush1.msra.mxu0 0.0
    %101 = vmatprep.subr.mxu0 0.0
    %102 = vmatpush1.msra.mxu0 0.0
    %103 = vmatprep.subr.mxu0 0.0
    %104 = vmatpush1.msra.mxu0 %v64
    %105 = vmatprep.subr.mxu0 0.0
    %106 = vmatpush1.msra.mxu0 %v63
    %107 = vmatprep.subr.mxu0 0.0
    %108 = vmatpush1.msra.mxu0 %v62
    %109 = vmatprep.subr.mxu0 0.0
    %110 = vmatpush1.msra.mxu0 %v61
    %111 = vmatprep.subr.mxu0 0.0
    %112 = vmatpush2.msra.mxu0 0.0
    %113 = vmatprep.subr.mxu0 0.0
    %114 = vmatpush2.msra.mxu0 0.0
    %115 = vmatprep.subr.mxu0 0.0
    %116 = vmatpush2.msra.mxu0 0.0
    %117 = vmatprep.subr.mxu0 0.0
    %118 = vmatpush2.msra.mxu0 0.0
    %119 = vmatprep.subr.mxu0 0.0
    %120 = vmatpush2.msra.mxu0 0.0
    %121 = vmatprep.subr.mxu0 0.0
    %122 = vmatpush2.msra.mxu0 0.0
    %123 = vmatprep.subr.mxu0 0.0
    %124 = vmatpush2.msra.mxu0 0.0
    %125 = vmatprep.subr.mxu0 0.0
    %126 = vmatpush2.msra.mxu0 0.0
    %127 = vmatprep.subr.mxu0 0.0
    %128 = vmatpush2.msra.mxu0 0.0
    %129 = vmatprep.subr.mxu0 0.0
    %130 = vmatpush2.msra.mxu0 0.0
    %131 = vmatprep.subr.mxu0 0.0
    %132 = vmatpush2.msra.mxu0 0.0
    %133 = vmatprep.subr.mxu0 0.0
    %134 = vmatpush2.msra.mxu0 0.0
    %135 = vmatprep.subr.mxu0 0.0
    %136 = vmatpush2.msra.mxu0 0.0
    %137 = vmatprep.subr.mxu0 0.0
    %138 = vmatpush2.msra.mxu0 0.0
    %139 = vmatprep.subr.mxu0 0.0
    %140 = vmatpush2.msra.mxu0 0.0
    %141 = vmatprep.subr.mxu0 0.0
    %142 = vmatpush2.msra.mxu0 0.0
    %143 = vmatprep.mubr.f32.mxu0 0.0
    %144 = vmatmul.mubr.f32.gmra.mxu0 %v74
    %v145 = vpop.f32.mrf.mxu0
    %v146 = vadd.f32 %v70, %v145
    %v147 = vpop.f32.mrf.mxu0
    %148 = vmatprep.mubr.f32.mxu0 0.0
    %149 = vmatmul.mubr.f32.gmra.mxu0 %v77
    %v150 = vpop.f32.mrf.mxu0
    %v151 = vadd.f32 %v70, %v150
    %v152 = vpop.f32.mrf.mxu0
    %153 = vdwg.mxu0
    %v154 = vtanh.pop %v146
    %v155 = vtanh.pop %v151
    %v156 = vld [vmem:[#allocation5] sm:$0x1]
    %v157 = vld [vmem:[#allocation5 + $0x1] sm:$0x1]
    %v160 = vlaneseq
    %v161 = vshrl.u32 %v160, 7
    %v162 = vsub.s32 0, %v161
    %v163 = vrot.slane %v156, %v162
    %v164 = vlaneseq
    %v165 = vshrl.u32 %v164, 7
    %v166 = vsub.s32 0, %v165
    %v167 = vrot.slane %v157, %v166
    %v170 = vmul.f32 %v154, %v163
    %v171 = vmul.f32 %v155, %v167
    %v172 = vsel %vm72, %v170, 0.0
    %173 = vadd.xlane.f32.xlu0 %v172
    %v174 = vpop.xlane.xlu0 %173
    %v175 = vsel %vm72, %v171, 0.0
    %176 = vadd.xlane.f32.xlu0 %v175
    %v177 = vpop.xlane.xlu0 %176
    %v180 = vlaneseq
    %v181 = vand.u32 %v180, 127
    %v182 = vlaneseq
    %v183 = vshrl.u32 %v182, 7
    %v184 = vsub.s32 %v181, %v183
    %v185 = vrot.slane %v174, %v184
    %v186 = vlaneseq
    %v187 = vshrl.u32 %v186, 7
    %v188 = vsub.s32 %v181, %v187
    %v189 = vrot.slane %v177, %v188
    %vm190 = vcmask 1041409
    %v191 = vsel %vm190, %v189, %v185
    %vm193 = vcmask 58368
    %v194 = vsel %vm193, %v191, -inf
    %195 = vmax.xlane.f32.xlu0 %v194
    %v196 = vpop.xlane.xlu0 %195
    %v198 = vlaneseq
    %v199 = vshrl.u32 %v198, 7
    %v200 = vsub.s32 0, %v199
    %v201 = vrot.slane %v196, %v200
    %v202 = vlaneseq
    %v203 = vshrl.u32 %v202, 7
    %v204 = vsub.s32 1, %v203
    %v205 = vrot.slane %v196, %v204
    %v208 = vsub.f32 %v174, %v201
    %v209 = vsub.f32 %v177, %v205
    %v210 = vmul.f32 %v208, 1.442695
    %v211 = vpow.pop %v210
    %v212 = vmul.f32 %v209, 1.442695
    %v213 = vpow.pop %v212
    %216 = vset.pattern.permute.xlu0 0
    %217 = vperm.xlu0 %216, %v211
    %v218 = vpop.permute.xlu0 %217
    %219 = vset.pattern.permute.xlu0 0
    %220 = vperm.xlu0 %219, %v213
    %v221 = vpop.permute.xlu0 %220
    %v222 = vlaneseq
    %v223 = vshrl.u32 %v222, 7
    %v224 = vsub.s32 %v181, %v223
    %v225 = vrot.slane %v218, %v224
    %v226 = vlaneseq
    %v227 = vshrl.u32 %v226, 7
    %v228 = vsub.s32 %v181, %v227
    %v229 = vrot.slane %v221, %v228
    %v230 = vsel %vm190, %v229, %v225
    %v232 = vsel %vm193, %v230, 0.0
    %233 = vadd.xlane.f32.xlu0 %v232
    %v234 = vpop.xlane.xlu0 %233
    %v236 = vlaneseq
    %v237 = vshrl.u32 %v236, 7
    %v238 = vsub.s32 0, %v237
    %v239 = vrot.slane %v234, %v238
    %v240 = vlaneseq
    %v241 = vshrl.u32 %v240, 7
    %v242 = vsub.s32 1, %v241
    %v243 = vrot.slane %v234, %v242
    %v246 = vrcp.pop %v239
    %v247 = vmul.f32 %v211, %v246
    %v248 = vrcp.pop %v243
    %v249 = vmul.f32 %v213, %v248
    %252 = vset.pattern.permute.xlu0 0
    %253 = vperm.xlu0 %252, %v247
    %v254 = vpop.permute.xlu0 %253
    %255 = vset.pattern.permute.xlu0 0
    %256 = vperm.xlu0 %255, %v249
    %v257 = vpop.permute.xlu0 %256
    %v258 = vlaneseq
    %v259 = vshrl.u32 %v258, 7
    %v260 = vsub.s32 %v181, %v259
    %v261 = vrot.slane %v254, %v260
    %v262 = vlaneseq
    %v263 = vshrl.u32 %v262, 7
    %v264 = vsub.s32 %v181, %v263
    %v265 = vrot.slane %v257, %v264
    %v266 = vsel %vm190, %v265, %v261
    %268 = vst.msk [vmem:[#allocation8] sm:$0x3] %vm193, %v266
    // Predicated region
    $region30: #{tpu_custom_call.1} parent=1 // pred_check
      _
    $region31: #{tpu_custom_call.1} parent=1 // pred_check_branch
      %270 = sbr.rel (0) target = $region33
    $region32: #{tpu_custom_call.1} parent=1 // pred_region
      %s272 = ssub.s32 32, 32
      %273 = vsyncadd [#allocation4], %s272
      %s275 = sshll.u32 [#allocation8], 4
      %s276 = int_to_ptr.vmem [resolvable:$true] %s275
      %278 = dma.vmem_to_hbm [thread:$0]  %s276, 32, %s4, [#allocation4]
    $region33: #{tpu_custom_call.1} parent=1 // pred_fallthru
      _
    // Predicated region
    $region34: #{tpu_custom_call.1} parent=1 // pred_check
      _
    $region35: #{tpu_custom_call.1} parent=1 // pred_check_branch
      %280 = sbr.rel (0) target = $region37
    $region36: #{tpu_custom_call.1} parent=1 // pred_region
      %281 = dma.done [#allocation4], 32
    $region37: #{tpu_custom_call.1} parent=1 // pred_fallthru
      _
    %282 = vsyncpa [#allocation3], 1
    %283 = vsyncpa [#allocation6], 1
    %284 = vsyncpa [#allocation4], 1

</llo_original>
